<compile_context>
chip_gen: v7x
topology: tpu7x:2x2x1
jax: 0.10.0
libtpu: 0.0.40
codegen_flags: <defaults>
</compile_context>

<pallas_src>
import jax
import jax.numpy as jnp
from jax.experimental import pallas as pl
from jax.experimental.pallas import tpu as pltpu

K_IN = 17       # csv-branch input features
F_REAL = 250    # hidden width in the PyTorch module
F_PAD = 256     # hidden width zero-padded to a clean lane multiple
OUT_PAD = 128   # lane-dense padded output width (real output lives in column 0)


def _round_up(n, m):
    return (n + m - 1) // m * m


def csv_fc2_kernel(y_ref, w1_ref, b1_ref, w2_ref, b2_ref, w3_ref, o_ref):
    """Fused csv (Linear->BN->ReLU->Dropout x2) + fc2 forward, eval mode.

    BatchNorm is pre-folded into the Linear weights/biases, so each layer is
    an MXU matmul + f32 bias-add + ReLU. Weights may be bf16 (MXU-native on
    every generation); elementwise math stays f32 (v5e-safe).
    """
    wd = w1_ref.dtype
    y = y_ref[...]                                              # [TB, K_IN] f32

    h = jnp.dot(y.astype(wd), w1_ref[...],
                preferred_element_type=jnp.float32)             # [TB, F_PAD]
    h = jnp.maximum(h + b1_ref[...], 0.0)

    h = jnp.dot(h.astype(wd), w2_ref[...],
                preferred_element_type=jnp.float32)             # [TB, F_PAD]
    h = jnp.maximum(h + b2_ref[...], 0.0)

    # fc2: Linear(250, 1, bias=False), zero-padded to 128 output lanes so the
    # store is a full, unmasked vreg write.
    o_ref[...] = jnp.dot(h.astype(wd), w3_ref[...],
                         preferred_element_type=jnp.float32)    # [TB, OUT_PAD]


def cnn_meta_forward(x, y, params, *, batch_tile=512):
    del x  # the reference forward() never touches the image branch
    w1, b1, w2, b2, w3 = params
    B = y.shape[0]

    # Batch tiling: a single block for small B; tiles of `batch_tile` rows with
    # a parallel grid (megacore / both v7x TensorCores) when B grows.
    tb = min(_round_up(B, 8), batch_tile)
    b_pad = _round_up(B, tb)
    if b_pad != B:
        y = jnp.pad(y, ((0, b_pad - B), (0, 0)))
    grid = (b_pad // tb,)

    bytes_accessed = (b_pad * K_IN * 4
                      + sum(int(p.size) * p.dtype.itemsize for p in params)
                      + b_pad * OUT_PAD * 4)
    cost = pl.CostEstimate(
        flops=2 * B * (K_IN * F_REAL + F_REAL * F_REAL + F_REAL),
        transcendentals=0,
        bytes_accessed=bytes_accessed,
    )

    def resident(shape):
        # Full-array block with a constant index_map: weights/biases stay in
        # VMEM across the whole batch loop (no per-step re-DMA).
        return pl.BlockSpec(shape, lambda i: (0,) * len(shape))

    out = pl.pallas_call(
        csv_fc2_kernel,
        out_shape=jax.ShapeDtypeStruct((b_pad, OUT_PAD), jnp.float32),
        grid_spec=pltpu.PrefetchScalarGridSpec(
            num_scalar_prefetch=0,
            grid=grid,
            in_specs=[
                pl.BlockSpec((tb, K_IN), lambda i: (i, 0)),   # y: tiled over batch
                resident(w1.shape), resident(b1.shape),
                resident(w2.shape), resident(b2.shape),
                resident(w3.shape),
            ],
            out_specs=pl.BlockSpec((tb, OUT_PAD), lambda i: (i, 0)),
        ),
        compiler_params=pltpu.CompilerParams(
            dimension_semantics=("parallel",)),
        cost_estimate=cost,
    )(y, w1, b1, w2, b2, w3)

    # Slice away batch padding and the 127 zero output lanes.
    return out[:B, :1]


def init_params(key, *, weights_dtype=jnp.bfloat16):
    """Deterministic init matching nn.Linear/nn.BatchNorm1d, BN pre-folded."""
    eps = 1e-5
    k1, k2, k3 = jax.random.split(key, 3)

    def linear(k, fin, fout, bias=True):
        bound = 1.0 / (fin ** 0.5)  # PyTorch default Linear init range
        kw, kb = jax.random.split(k)
        w = jax.random.uniform(kw, (fin, fout), jnp.float32, -bound, bound)
        b = (jax.random.uniform(kb, (1, fout), jnp.float32, -bound, bound)
             if bias else None)
        return w, b

    w1, b1 = linear(k1, K_IN, F_REAL)
    w2, b2 = linear(k2, F_REAL, F_REAL)
    w3, _ = linear(k3, F_REAL, 1, bias=False)

    # Eval-mode BatchNorm1d(250) with fresh running stats (mean=0, var=1,
    # gamma=1, beta=0), folded exactly into the preceding Linear:
    #   scale = gamma / sqrt(var + eps); w' = w*scale; b' = b*scale + (beta - mean*scale)
    scale = 1.0 / jnp.sqrt(jnp.float32(1.0) + eps)
    w1, b1 = w1 * scale, b1 * scale
    w2, b2 = w2 * scale, b2 * scale

    # Zero-pad feature dim 250 -> 256 and fc2 output 1 -> 128 (lane-dense).
    # Zero padding keeps results exact: padded activation columns are 0 after
    # ReLU and multiply only into zero weight rows downstream.
    w1 = jnp.pad(w1, ((0, 0), (0, F_PAD - F_REAL)))
    b1 = jnp.pad(b1, ((0, 0), (0, F_PAD - F_REAL)))
    w2 = jnp.pad(w2, ((0, F_PAD - F_REAL), (0, F_PAD - F_REAL)))
    b2 = jnp.pad(b2, ((0, 0), (0, F_PAD - F_REAL)))
    w3 = jnp.pad(w3, ((0, F_PAD - F_REAL), (0, OUT_PAD - 1)))

    # bf16 weights: native MXU rate everywhere, half the weight DMA bytes.
    # Biases stay f32 and all elementwise math is f32 (v5e has no bf16 VPU).
    w1, w2, w3 = (w.astype(weights_dtype) for w in (w1, w2, w3))

    # TODO(synk): training-mode BatchNorm (batch statistics) and stochastic
    # Dropout are not reproduced; eval-mode semantics are implemented instead.
    return (w1, b1, w2, b2, w3)


if __name__ == "__main__":
    key = jax.random.PRNGKey(0)
    kx, ky, kp = jax.random.split(key, 3)

    B = 8
    # x is the (unused) image-branch input; forward() ignores it.
    x = jax.random.normal(kx, (B, 264, 8, 8), jnp.float32)
    # y is the 17-dim metadata/CSV feature vector per sample.
    y = jax.random.normal(ky, (B, K_IN), jnp.float32)

    params = init_params(kp)

    out = cnn_meta_forward(x, y, params)
    out = jax.block_until_ready(out)
    assert out.shape == (B, 1) and out.dtype == jnp.float32

    print("KERNEL_OK")
</pallas_src>

<mosaic_0001>
module attributes {stable_mosaic.version = 11 : i64} {
  func.func @csv_fc2_kernel(%arg0: i32, %arg1: memref<8x17xf32, #tpu.memory_space<vmem>>, %arg2: memref<17x256xbf16, #tpu.memory_space<vmem>>, %arg3: memref<1x256xf32, #tpu.memory_space<vmem>>, %arg4: memref<256x256xbf16, #tpu.memory_space<vmem>>, %arg5: memref<1x256xf32, #tpu.memory_space<vmem>>, %arg6: memref<256x128xbf16, #tpu.memory_space<vmem>>, %arg7: memref<8x128xf32, #tpu.memory_space<vmem>>) attributes {dimension_semantics = [#tpu.dimension_semantics<parallel>], iteration_bounds = array<i64: 1>, scalar_prefetch = 0 : i64, scratch_operands = 0 : i64, tpu.core_type = #tpu.core_type<tc>, window_params = [{transform_indices = @transform_0, window_bounds = array<i64: 8, 17>}, {pipeline_mode = #tpu.pipeline_mode<synchronous>, transform_indices = @transform_1, window_bounds = array<i64: 17, 256>}, {pipeline_mode = #tpu.pipeline_mode<synchronous>, transform_indices = @transform_2, window_bounds = array<i64: 1, 256>}, {pipeline_mode = #tpu.pipeline_mode<synchronous>, transform_indices = @transform_3, window_bounds = array<i64: 256, 256>}, {pipeline_mode = #tpu.pipeline_mode<synchronous>, transform_indices = @transform_4, window_bounds = array<i64: 1, 256>}, {pipeline_mode = #tpu.pipeline_mode<synchronous>, transform_indices = @transform_5, window_bounds = array<i64: 256, 128>}, {transform_indices = @transform_6, window_bounds = array<i64: 8, 128>}]} {
    %c0 = arith.constant 0 : index
    %c0_0 = arith.constant 0 : index
    %0 = vector.load %arg1[%c0, %c0_0] : memref<8x17xf32, #tpu.memory_space<vmem>>, vector<8x17xf32>
    %1 = arith.truncf %0 : vector<8x17xf32> to vector<8x17xbf16>
    %c0_1 = arith.constant 0 : index
    %c0_2 = arith.constant 0 : index
    %2 = vector.load %arg2[%c0_1, %c0_2] : memref<17x256xbf16, #tpu.memory_space<vmem>>, vector<17x256xbf16>
    %cst = arith.constant dense<0.000000e+00> : vector<8x256xf32>
    %3 = tpu.matmul %1, %2, %cst {dimension_numbers = #tpu.dot_dimension_numbers<[1], [0], [0], [1], [0, 0, 1, 1], [], []>} : vector<8x17xbf16>, vector<17x256xbf16>, vector<8x256xf32> -> vector<8x256xf32>
    %c0_3 = arith.constant 0 : index
    %c0_4 = arith.constant 0 : index
    %4 = vector.load %arg3[%c0_3, %c0_4] : memref<1x256xf32, #tpu.memory_space<vmem>>, vector<1x256xf32>
    %5 = vector.broadcast %4 : vector<1x256xf32> to vector<8x256xf32>
    %6 = arith.addf %3, %5 : vector<8x256xf32>
    %cst_5 = arith.constant 0.000000e+00 : f32
    %7 = vector.broadcast %cst_5 : f32 to vector<8x256xf32>
    %8 = arith.maximumf %6, %7 : vector<8x256xf32>
    %9 = arith.truncf %8 : vector<8x256xf32> to vector<8x256xbf16>
    %c0_6 = arith.constant 0 : index
    %c0_7 = arith.constant 0 : index
    %10 = vector.load %arg4[%c0_6, %c0_7] : memref<256x256xbf16, #tpu.memory_space<vmem>>, vector<256x256xbf16>
    %cst_8 = arith.constant dense<0.000000e+00> : vector<8x256xf32>
    %11 = tpu.matmul %9, %10, %cst_8 {dimension_numbers = #tpu.dot_dimension_numbers<[1], [0], [0], [1], [0, 0, 1, 1], [], []>} : vector<8x256xbf16>, vector<256x256xbf16>, vector<8x256xf32> -> vector<8x256xf32>
    %c0_9 = arith.constant 0 : index
    %c0_10 = arith.constant 0 : index
    %12 = vector.load %arg5[%c0_9, %c0_10] : memref<1x256xf32, #tpu.memory_space<vmem>>, vector<1x256xf32>
    %13 = vector.broadcast %12 : vector<1x256xf32> to vector<8x256xf32>
    %14 = arith.addf %11, %13 : vector<8x256xf32>
    %cst_11 = arith.constant 0.000000e+00 : f32
    %15 = vector.broadcast %cst_11 : f32 to vector<8x256xf32>
    %16 = arith.maximumf %14, %15 : vector<8x256xf32>
    %17 = arith.truncf %16 : vector<8x256xf32> to vector<8x256xbf16>
    %c0_12 = arith.constant 0 : index
    %c0_13 = arith.constant 0 : index
    %18 = vector.load %arg6[%c0_12, %c0_13] : memref<256x128xbf16, #tpu.memory_space<vmem>>, vector<256x128xbf16>
    %cst_14 = arith.constant dense<0.000000e+00> : vector<8x128xf32>
    %19 = tpu.matmul %17, %18, %cst_14 {dimension_numbers = #tpu.dot_dimension_numbers<[1], [0], [0], [1], [0, 0, 1, 1], [], []>} : vector<8x256xbf16>, vector<256x128xbf16>, vector<8x128xf32> -> vector<8x128xf32>
    %c0_15 = arith.constant 0 : index
    %c0_16 = arith.constant 0 : index
    %20 = vector.load %arg7[%c0_15, %c0_16] : memref<8x128xf32, #tpu.memory_space<vmem>>, vector<8x128xf32>
    tpu.vector_store %arg7[%c0_15, %c0_16], %19 {strides = array<i32>} : memref<8x128xf32, #tpu.memory_space<vmem>>, vector<8x128xf32>,
    return
  }
  func.func @transform_0(%arg0: i32) -> (i32, i32) {
    %c0_i32 = arith.constant 0 : i32
    %c0_i32_0 = arith.constant 0 : i32
    return %arg0, %c0_i32 : i32, i32
  }
  func.func @transform_1(%arg0: i32) -> (i32, i32) {
    %c0_i32 = arith.constant 0 : i32
    %c0_i32_0 = arith.constant 0 : i32
    %c0_i32_1 = arith.constant 0 : i32
    return %c0_i32, %c0_i32_0 : i32, i32
  }
  func.func @transform_2(%arg0: i32) -> (i32, i32) {
    %c0_i32 = arith.constant 0 : i32
    %c0_i32_0 = arith.constant 0 : i32
    %c0_i32_1 = arith.constant 0 : i32
    return %c0_i32, %c0_i32_0 : i32, i32
  }
  func.func @transform_3(%arg0: i32) -> (i32, i32) {
    %c0_i32 = arith.constant 0 : i32
    %c0_i32_0 = arith.constant 0 : i32
    %c0_i32_1 = arith.constant 0 : i32
    return %c0_i32, %c0_i32_0 : i32, i32
  }
  func.func @transform_4(%arg0: i32) -> (i32, i32) {
    %c0_i32 = arith.constant 0 : i32
    %c0_i32_0 = arith.constant 0 : i32
    %c0_i32_1 = arith.constant 0 : i32
    return %c0_i32, %c0_i32_0 : i32, i32
  }
  func.func @transform_5(%arg0: i32) -> (i32, i32) {
    %c0_i32 = arith.constant 0 : i32
    %c0_i32_0 = arith.constant 0 : i32
    %c0_i32_1 = arith.constant 0 : i32
    return %c0_i32, %c0_i32_0 : i32, i32
  }
  func.func @transform_6(%arg0: i32) -> (i32, i32) {
    %c0_i32 = arith.constant 0 : i32
    %c0_i32_0 = arith.constant 0 : i32
    return %arg0, %c0_i32 : i32, i32
  }
}

</mosaic_0001>

<llo_original>
// kernel: tpu_custom_call.1
$region0: #{tpu_custom_call.1}
  #allocation0 [shape = 'u32[]', space=smem, size = 0x4, offset = 0x4, fixed_abs, tag = 'smem constant byte address 0x4 - core index']
  #allocation1 [shape = 'u32[144,128]{1,0:T(1,128)}', space=vmem, size = 0x12000, scoped, tag = 'internal scratch']
  %s0 = inlined_call_operand.hbm [shape: f32[8,17], index: 0, kind: input, shape index: {}]
  %s1 = inlined_call_operand.hbm [shape: bf16[17,256], index: 1, kind: input, shape index: {}]
  %s2 = inlined_call_operand.vmem [shape: f32[1,256], index: 2, kind: input, shape index: {}]
  %s3 = inlined_call_operand.hbm [shape: bf16[256,256], index: 3, kind: input, shape index: {}]
  %s4 = inlined_call_operand.vmem [shape: f32[1,256], index: 4, kind: input, shape index: {}]
  %s5 = inlined_call_operand.hbm [shape: bf16[256,128], index: 5, kind: input, shape index: {}]
  %s6 = inlined_call_operand.hbm [shape: f32[8,128], index: 6, kind: output, shape index: {}]
  %s7 = sld [smem:[#allocation0]]
  $region50: #{tpu_custom_call.1} parent=0
    _
  %s9 = ssub.s32 1, %s7
  %s10 = scalar_select 0, %s9, %s7
  $region1: #{tpu_custom_call.1} parent=0
    #allocation2 [shape = 'u8[4096]{0}', space=vmem, size = 0x1000, scoped, tag = 'input window, operand 0, single buffered']
    #allocation3 [shape = 's32[1]{0}', space=sflag, size = 0x4, scoped, tag = 'scoped memory for tpu_custom_call.1']
    #allocation4 [shape = 's32[1]{0}', space=sflag, size = 0x4, scoped, tag = 'scoped memory for tpu_custom_call.1']
    #allocation5 [shape = 'u8[12288]{0}', space=vmem, size = 0x3000, scoped, tag = 'input window, operand 1, single buffered']
    #allocation6 [shape = 's32[1]{0}', space=sflag, size = 0x4, scoped, tag = 'scoped memory for tpu_custom_call.1']
    #allocation7 [shape = 'u8[131072]{0}', space=vmem, size = 0x20000, scoped, tag = 'input window, operand 3, single buffered']
    #allocation8 [shape = 'u8[65536]{0}', space=vmem, size = 0x10000, scoped, tag = 'input window, operand 5, single buffered']
    #allocation9 [shape = 's32[1]{0}', space=sflag, size = 0x4, scoped, tag = 'scoped memory for tpu_custom_call.1']
    #allocation10 [shape = 'u8[4096]{0}', space=vmem, size = 0x1000, scoped, tag = 'output window, operand 0, single buffered']
    %11 = vsyncpa [#allocation3], 0
    %12 = vsyncpa [#allocation6], 0
    %13 = vsyncpa [#allocation9], 0
    %14 = vsyncpa [#allocation4], 0
    // Predicated region
    $region2: #{tpu_custom_call.1} parent=1 // pred_check
      _
    $region3: #{tpu_custom_call.1} parent=1 // pred_check_branch
      %16 = sbr.rel (0) target = $region5
    $region4: #{tpu_custom_call.1} parent=1 // pred_region
      %s18 = ssub.s32 128, 128
      %19 = vsyncadd [#allocation3], %s18
      %s21 = sshll.u32 [#allocation2], 4
      %s22 = int_to_ptr.vmem [resolvable:$true] %s21
      %24 = dma.hbm_to_vmem [thread:$0]  %s0, 128, %s22, [#allocation3]
    $region5: #{tpu_custom_call.1} parent=1 // pred_fallthru
      _
    // Predicated region
    $region6: #{tpu_custom_call.1} parent=1 // pred_check
      _
    $region7: #{tpu_custom_call.1} parent=1 // pred_check_branch
      %26 = sbr.rel (0) target = $region9
    $region8: #{tpu_custom_call.1} parent=1 // pred_region
      %s28 = ssub.s32 384, 384
      %29 = vsyncadd [#allocation6], %s28
      %s30 = sshll.u32 [#allocation5], 4
      %s31 = int_to_ptr.vmem [resolvable:$true] %s30
      %36 = dma.hbm_to_vmem [thread:$0]  %s1, 384, %s31, [#allocation6], 128, 128, 8
    $region9: #{tpu_custom_call.1} parent=1 // pred_fallthru
      _
    // Predicated region
    $region10: #{tpu_custom_call.1} parent=1 // pred_check
      _
    $region11: #{tpu_custom_call.1} parent=1 // pred_check_branch
      %38 = sbr.rel (0) target = $region13
    $region12: #{tpu_custom_call.1} parent=1 // pred_region
      _
    $region13: #{tpu_custom_call.1} parent=1 // pred_fallthru
      _
    // Predicated region
    $region14: #{tpu_custom_call.1} parent=1 // pred_check
      _
    $region15: #{tpu_custom_call.1} parent=1 // pred_check_branch
      %40 = sbr.rel (0) target = $region17
    $region16: #{tpu_custom_call.1} parent=1 // pred_region
      %s42 = ssub.s32 4096, 4096
      %43 = vsyncadd [#allocation6], %s42
      %s44 = sshll.u32 [#allocation7], 4
      %s45 = int_to_ptr.vmem [resolvable:$true] %s44
      %50 = dma.hbm_to_vmem [thread:$0]  %s3, 4096, %s45, [#allocation6], 128, 128, 8
    $region17: #{tpu_custom_call.1} parent=1 // pred_fallthru
      _
    // Predicated region
    $region18: #{tpu_custom_call.1} parent=1 // pred_check
      _
    $region19: #{tpu_custom_call.1} parent=1 // pred_check_branch
      %52 = sbr.rel (0) target = $region21
    $region20: #{tpu_custom_call.1} parent=1 // pred_region
      _
    $region21: #{tpu_custom_call.1} parent=1 // pred_fallthru
      _
    // Predicated region
    $region22: #{tpu_custom_call.1} parent=1 // pred_check
      _
    $region23: #{tpu_custom_call.1} parent=1 // pred_check_branch
      %54 = sbr.rel (0) target = $region25
    $region24: #{tpu_custom_call.1} parent=1 // pred_region
      %s56 = ssub.s32 2048, 2048
      %57 = vsyncadd [#allocation9], %s56
      %s58 = sshll.u32 [#allocation8], 4
      %s59 = int_to_ptr.vmem [resolvable:$true] %s58
      %64 = dma.hbm_to_vmem [thread:$0]  %s5, 2048, %s59, [#allocation9], 64, 64, 4
    $region25: #{tpu_custom_call.1} parent=1 // pred_fallthru
      _
    // Predicated region
    $region26: #{tpu_custom_call.1} parent=1 // pred_check
      _
    $region27: #{tpu_custom_call.1} parent=1 // pred_check_branch
      %66 = sbr.rel (0) target = $region29
    $region28: #{tpu_custom_call.1} parent=1 // pred_region
      %67 = dma.done [#allocation3], 128
    $region29: #{tpu_custom_call.1} parent=1 // pred_fallthru
      _
    // Predicated region
    $region30: #{tpu_custom_call.1} parent=1 // pred_check
      _
    $region31: #{tpu_custom_call.1} parent=1 // pred_check_branch
      %69 = sbr.rel (0) target = $region33
    $region32: #{tpu_custom_call.1} parent=1 // pred_region
      %70 = dma.done [#allocation6], 384
    $region33: #{tpu_custom_call.1} parent=1 // pred_fallthru
      _
    // Predicated region
    $region34: #{tpu_custom_call.1} parent=1 // pred_check
      _
    $region35: #{tpu_custom_call.1} parent=1 // pred_check_branch
      %72 = sbr.rel (0) target = $region37
    $region36: #{tpu_custom_call.1} parent=1 // pred_region
      %73 = dma.done [#allocation6], 4096
    $region37: #{tpu_custom_call.1} parent=1 // pred_fallthru
      _
    // Predicated region
    $region38: #{tpu_custom_call.1} parent=1 // pred_check
      _
    $region39: #{tpu_custom_call.1} parent=1 // pred_check_branch
      %75 = sbr.rel (0) target = $region41
    $region40: #{tpu_custom_call.1} parent=1 // pred_region
      %76 = dma.done [#allocation9], 2048
    $region41: #{tpu_custom_call.1} parent=1 // pred_fallthru
      _
    %v78 = vld [vmem:[#allocation2] sm:$0xff]
    %v79 = vpack.c.bf16 %v78, %v78
    %v80 = vld [vmem:[#allocation5] sm:$0xff]
    %v81 = vld [vmem:[#allocation5 + $0x8] sm:$0xff]
    %v82 = vld [vmem:[#allocation5 + $0x10] sm:$0x11]
    %v83 = vld [vmem:[%s2] sm:$0x3]
    %v85 = vlaneseq
    %v86 = vshrl.u32 %v85, 7
    %v87 = vsub.s32 0, %v86
    %v88 = vrot.slane %v83, %v87
    %v89 = vlaneseq
    %v90 = vshrl.u32 %v89, 7
    %v91 = vsub.s32 1, %v90
    %v92 = vrot.slane %v83, %v91
    %v98 = vunpack.c.l.b16 %v80
    %v99 = vunpack.c.h.b16 %v80
    %v100 = vunpack.c.l.b16 %v81
    %v101 = vunpack.c.h.b16 %v81
    %v102 = vunpack.c.l.b16 %v82
    %v103 = vunpack.c.h.b16 %v82
    %v104 = vpack.c.b16 %v100, %v98
    %v105 = vpack.c.b16 %v101, %v99
    %v106 = vpack.c.b16 %v102, %v102
    %v107 = vpack.c.b16 %v103, %v103
    %vm110 = vcmask 138240
    %v112 = vsel %vm110, %v79, 0
    %vm114 = vcmask 1040384
    %v115 = vsel 0, 4294967295, 65535
    %v116 = vsel %vm114, %v115, 0
    %v118 = vand.u32 %v106, %v116
    %v121 = vand.u32 %v107, %v116
    %123 = vmatprep.subr.bf16.mxu0 %v105
    %124 = vmatpush1.bf16.msra.mxu0 %v104
    %125 = vmatprep.subr.bf16.mxu0 %v121
    %126 = vmatpush1.bf16.msra.mxu0 %v118
    %127 = vmatprep.subr.bf16.mxu0 0
    %128 = vmatpush1.bf16.msra.mxu0 0
    %129 = vmatprep.subr.bf16.mxu0 0
    %130 = vmatpush1.bf16.msra.mxu0 0
    %131 = vmatprep.subr.bf16.mxu0 0
    %132 = vmatpush1.bf16.msra.mxu0 0
    %133 = vmatprep.subr.bf16.mxu0 0
    %134 = vmatpush1.bf16.msra.mxu0 0
    %135 = vmatprep.subr.bf16.mxu0 0
    %136 = vmatpush1.bf16.msra.mxu0 0
    %137 = vmatprep.subr.bf16.mxu0 0
    %138 = vmatpush1.bf16.msra.mxu0 0
    %139 = vmatprep.subr.bf16.mxu0 0
    %140 = vmatpush1.bf16.msra.mxu0 0
    %141 = vmatprep.subr.bf16.mxu0 0
    %142 = vmatpush1.bf16.msra.mxu0 0
    %143 = vmatprep.subr.bf16.mxu0 0
    %144 = vmatpush1.bf16.msra.mxu0 0
    %145 = vmatprep.subr.bf16.mxu0 0
    %146 = vmatpush1.bf16.msra.mxu0 0
    %147 = vmatprep.subr.bf16.mxu0 0
    %148 = vmatpush1.bf16.msra.mxu0 0
    %149 = vmatprep.subr.bf16.mxu0 0
    %150 = vmatpush1.bf16.msra.mxu0 0
    %151 = vmatprep.subr.bf16.mxu0 0
    %152 = vmatpush1.bf16.msra.mxu0 0
    %153 = vmatprep.subr.bf16.mxu0 0
    %154 = vmatpush1.bf16.msra.mxu0 0
    %155 = vmatprep.mubr.bf16.mxu0 0
    %156 = vmatmul.mubr.bf16.gmra.mrb[0].mxu0 %v112
    %v157 = vpop.f32.mrb[0].mxu0
    %v158 = vadd.f32 %v88, %v157
    %v159 = vpop.f32.mrb[0].mxu0
    %v160 = vadd.f32 %v92, %v159
    %v161 = vpop.f32.mrb[0].mxu0
    %v162 = vpop.f32.mrb[0].mxu0
    %163 = vdwg.mxu0
    %v164 = vmax.f32 %v158, 0.0
    %v165 = vmax.f32 %v160, 0.0
    %v166 = vpack.c.bf16 %v164, %v164
    %v167 = vpack.c.bf16 %v165, %v165
    %v168 = vld [vmem:[#allocation7] sm:$0xff]
    %v169 = vld [vmem:[#allocation7 + $0x8] sm:$0xff]
    %v170 = vld [vmem:[#allocation7 + $0x10] sm:$0xff]
    %v171 = vld [vmem:[#allocation7 + $0x18] sm:$0xff]
    %v172 = vld [vmem:[#allocation7 + $0x20] sm:$0xff]
    %v173 = vld [vmem:[#allocation7 + $0x28] sm:$0xff]
    %v174 = vld [vmem:[#allocation7 + $0x30] sm:$0xff]
    %v175 = vld [vmem:[#allocation7 + $0x38] sm:$0xff]
    %v176 = vld [vmem:[#allocation7 + $0x40] sm:$0xff]
    %v177 = vld [vmem:[#allocation7 + $0x48] sm:$0xff]
    %v178 = vld [vmem:[#allocation7 + $0x50] sm:$0xff]
    %v179 = vld [vmem:[#allocation7 + $0x58] sm:$0xff]
    %v180 = vld [vmem:[#allocation7 + $0x60] sm:$0xff]
    %v181 = vld [vmem:[#allocation7 + $0x68] sm:$0xff]
    %v182 = vld [vmem:[#allocation7 + $0x70] sm:$0xff]
    %v183 = vld [vmem:[#allocation7 + $0x78] sm:$0xff]
    %v184 = vld [vmem:[#allocation7 + $0x80] sm:$0xff]
    %v185 = vld [vmem:[#allocation7 + $0x88] sm:$0xff]
    %v186 = vld [vmem:[#allocation7 + $0x90] sm:$0xff]
    %v187 = vld [vmem:[#allocation7 + $0x98] sm:$0xff]
    %v188 = vld [vmem:[#allocation7 + $0xa0] sm:$0xff]
    %v189 = vld [vmem:[#allocation7 + $0xa8] sm:$0xff]
    %v190 = vld [vmem:[#allocation7 + $0xb0] sm:$0xff]
    %v191 = vld [vmem:[#allocation7 + $0xb8] sm:$0xff]
    %v192 = vld [vmem:[#allocation7 + $0xc0] sm:$0xff]
    %v193 = vld [vmem:[#allocation7 + $0xc8] sm:$0xff]
    %v194 = vld [vmem:[#allocation7 + $0xd0] sm:$0xff]
    %v195 = vld [vmem:[#allocation7 + $0xd8] sm:$0xff]
    %v196 = vld [vmem:[#allocation7 + $0xe0] sm:$0xff]
    %v197 = vld [vmem:[#allocation7 + $0xe8] sm:$0xff]
    %v198 = vld [vmem:[#allocation7 + $0xf0] sm:$0xff]
    %v199 = vld [vmem:[#allocation7 + $0xf8] sm:$0xff]
    %v200 = vld [vmem:[%s4] sm:$0x3]
    %v202 = vlaneseq
    %v203 = vshrl.u32 %v202, 7
    %v204 = vsub.s32 0, %v203
    %v205 = vrot.slane %v200, %v204
    %v206 = vlaneseq
    %v207 = vshrl.u32 %v206, 7
    %v208 = vsub.s32 1, %v207
    %v209 = vrot.slane %v200, %v208
    %v244 = vunpack.c.l.b16 %v168
    %v245 = vunpack.c.h.b16 %v168
    %v246 = vunpack.c.l.b16 %v169
    %v247 = vunpack.c.h.b16 %v169
    %v248 = vunpack.c.l.b16 %v170
    %v249 = vunpack.c.h.b16 %v170
    %v250 = vunpack.c.l.b16 %v171
    %v251 = vunpack.c.h.b16 %v171
    %v252 = vunpack.c.l.b16 %v172
    %v253 = vunpack.c.h.b16 %v172
    %v254 = vunpack.c.l.b16 %v173
    %v255 = vunpack.c.h.b16 %v173
    %v256 = vunpack.c.l.b16 %v174
    %v257 = vunpack.c.h.b16 %v174
    %v258 = vunpack.c.l.b16 %v175
    %v259 = vunpack.c.h.b16 %v175
    %v260 = vunpack.c.l.b16 %v176
    %v261 = vunpack.c.h.b16 %v176
    %v262 = vunpack.c.l.b16 %v177
    %v263 = vunpack.c.h.b16 %v177
    %v264 = vunpack.c.l.b16 %v178
    %v265 = vunpack.c.h.b16 %v178
    %v266 = vunpack.c.l.b16 %v179
    %v267 = vunpack.c.h.b16 %v179
    %v268 = vunpack.c.l.b16 %v180
    %v269 = vunpack.c.h.b16 %v180
    %v270 = vunpack.c.l.b16 %v181
    %v271 = vunpack.c.h.b16 %v181
    %v272 = vunpack.c.l.b16 %v182
    %v273 = vunpack.c.h.b16 %v182
    %v274 = vunpack.c.l.b16 %v183
    %v275 = vunpack.c.h.b16 %v183
    %v276 = vunpack.c.l.b16 %v184
    %v277 = vunpack.c.h.b16 %v184
    %v278 = vunpack.c.l.b16 %v185
    %v279 = vunpack.c.h.b16 %v185
    %v280 = vunpack.c.l.b16 %v186
    %v281 = vunpack.c.h.b16 %v186
    %v282 = vunpack.c.l.b16 %v187
    %v283 = vunpack.c.h.b16 %v187
    %v284 = vunpack.c.l.b16 %v188
    %v285 = vunpack.c.h.b16 %v188
    %v286 = vunpack.c.l.b16 %v189
    %v287 = vunpack.c.h.b16 %v189
    %v288 = vunpack.c.l.b16 %v190
    %v289 = vunpack.c.h.b16 %v190
    %v290 = vunpack.c.l.b16 %v191
    %v291 = vunpack.c.h.b16 %v191
    %v292 = vunpack.c.l.b16 %v192
    %v293 = vunpack.c.h.b16 %v192
    %v294 = vunpack.c.l.b16 %v193
    %v295 = vunpack.c.h.b16 %v193
    %v296 = vunpack.c.l.b16 %v194
    %v297 = vunpack.c.h.b16 %v194
    %v298 = vunpack.c.l.b16 %v195
    %v299 = vunpack.c.h.b16 %v195
    %v300 = vunpack.c.l.b16 %v196
    %v301 = vunpack.c.h.b16 %v196
    %v302 = vunpack.c.l.b16 %v197
    %v303 = vunpack.c.h.b16 %v197
    %v304 = vunpack.c.l.b16 %v198
    %v305 = vunpack.c.h.b16 %v198
    %v306 = vunpack.c.l.b16 %v199
    %v307 = vunpack.c.h.b16 %v199
    %v308 = vpack.c.b16 %v246, %v244
    %v309 = vpack.c.b16 %v247, %v245
    %v310 = vpack.c.b16 %v250, %v248
    %v311 = vpack.c.b16 %v251, %v249
    %v312 = vpack.c.b16 %v254, %v252
    %v313 = vpack.c.b16 %v255, %v253
    %v314 = vpack.c.b16 %v258, %v256
    %v315 = vpack.c.b16 %v259, %v257
    %v316 = vpack.c.b16 %v262, %v260
    %v317 = vpack.c.b16 %v263, %v261
    %v318 = vpack.c.b16 %v266, %v264
    %v319 = vpack.c.b16 %v267, %v265
    %v320 = vpack.c.b16 %v270, %v268
    %v321 = vpack.c.b16 %v271, %v269
    %v322 = vpack.c.b16 %v274, %v272
    %v323 = vpack.c.b16 %v275, %v273
    %v324 = vpack.c.b16 %v278, %v276
    %v325 = vpack.c.b16 %v279, %v277
    %v326 = vpack.c.b16 %v282, %v280
    %v327 = vpack.c.b16 %v283, %v281
    %v328 = vpack.c.b16 %v286, %v284
    %v329 = vpack.c.b16 %v287, %v285
    %v330 = vpack.c.b16 %v290, %v288
    %v331 = vpack.c.b16 %v291, %v289
    %v332 = vpack.c.b16 %v294, %v292
    %v333 = vpack.c.b16 %v295, %v293
    %v334 = vpack.c.b16 %v298, %v296
    %v335 = vpack.c.b16 %v299, %v297
    %v336 = vpack.c.b16 %v302, %v300
    %v337 = vpack.c.b16 %v303, %v301
    %v338 = vpack.c.b16 %v306, %v304
    %v339 = vpack.c.b16 %v307, %v305
    %372 = vmatprep.subr.bf16.mxu0 %v309
    %373 = vmatpush1.bf16.msra.mxu0 %v308
    %374 = vmatprep.subr.bf16.mxu0 %v311
    %375 = vmatpush1.bf16.msra.mxu0 %v310
    %376 = vmatprep.subr.bf16.mxu0 %v313
    %377 = vmatpush1.bf16.msra.mxu0 %v312
    %378 = vmatprep.subr.bf16.mxu0 %v315
    %379 = vmatpush1.bf16.msra.mxu0 %v314
    %380 = vmatprep.subr.bf16.mxu0 %v317
    %381 = vmatpush1.bf16.msra.mxu0 %v316
    %382 = vmatprep.subr.bf16.mxu0 %v319
    %383 = vmatpush1.bf16.msra.mxu0 %v318
    %384 = vmatprep.subr.bf16.mxu0 %v321
    %385 = vmatpush1.bf16.msra.mxu0 %v320
    %386 = vmatprep.subr.bf16.mxu0 %v323
    %387 = vmatpush1.bf16.msra.mxu0 %v322
    %388 = vmatprep.subr.bf16.mxu0 %v325
    %389 = vmatpush1.bf16.msra.mxu0 %v324
    %390 = vmatprep.subr.bf16.mxu0 %v327
    %391 = vmatpush1.bf16.msra.mxu0 %v326
    %392 = vmatprep.subr.bf16.mxu0 %v329
    %393 = vmatpush1.bf16.msra.mxu0 %v328
    %394 = vmatprep.subr.bf16.mxu0 %v331
    %395 = vmatpush1.bf16.msra.mxu0 %v330
    %396 = vmatprep.subr.bf16.mxu0 %v333
    %397 = vmatpush1.bf16.msra.mxu0 %v332
    %398 = vmatprep.subr.bf16.mxu0 %v335
    %399 = vmatpush1.bf16.msra.mxu0 %v334
    %400 = vmatprep.subr.bf16.mxu0 %v337
    %401 = vmatpush1.bf16.msra.mxu0 %v336
    %402 = vmatprep.subr.bf16.mxu0 %v339
    %403 = vmatpush1.bf16.msra.mxu0 %v338
    %404 = vmatprep.mubr.bf16.mxu0 %v167
    %405 = vmatmul.mubr.bf16.gmra.mrb[0].mxu0 %v166
    %v406 = vpop.f32.mrb[0].mxu0
    %v407 = vadd.f32 %v205, %v406
    %v408 = vpop.f32.mrb[0].mxu0
    %v409 = vadd.f32 %v209, %v408
    %v410 = vpop.f32.mrb[0].mxu0
    %v411 = vpop.f32.mrb[0].mxu0
    %412 = vdwg.mxu0
    %v413 = vmax.f32 %v407, 0.0
    %v414 = vmax.f32 %v409, 0.0
    %v415 = vpack.c.bf16 %v413, %v413
    %v416 = vpack.c.bf16 %v414, %v414
    %v417 = vld [vmem:[#allocation8] sm:$0xf]
    %v418 = vld [vmem:[#allocation8 + $0x4] sm:$0xf]
    %v419 = vld [vmem:[#allocation8 + $0x8] sm:$0xf]
    %v420 = vld [vmem:[#allocation8 + $0xc] sm:$0xf]
    %v421 = vld [vmem:[#allocation8 + $0x10] sm:$0xf]
    %v422 = vld [vmem:[#allocation8 + $0x14] sm:$0xf]
    %v423 = vld [vmem:[#allocation8 + $0x18] sm:$0xf]
    %v424 = vld [vmem:[#allocation8 + $0x1c] sm:$0xf]
    %v425 = vld [vmem:[#allocation8 + $0x20] sm:$0xf]
    %v426 = vld [vmem:[#allocation8 + $0x24] sm:$0xf]
    %v427 = vld [vmem:[#allocation8 + $0x28] sm:$0xf]
    %v428 = vld [vmem:[#allocation8 + $0x2c] sm:$0xf]
    %v429 = vld [vmem:[#allocation8 + $0x30] sm:$0xf]
    %v430 = vld [vmem:[#allocation8 + $0x34] sm:$0xf]
    %v431 = vld [vmem:[#allocation8 + $0x38] sm:$0xf]
    %v432 = vld [vmem:[#allocation8 + $0x3c] sm:$0xf]
    %v433 = vld [vmem:[#allocation8 + $0x40] sm:$0xf]
    %v434 = vld [vmem:[#allocation8 + $0x44] sm:$0xf]
    %v435 = vld [vmem:[#allocation8 + $0x48] sm:$0xf]
    %v436 = vld [vmem:[#allocation8 + $0x4c] sm:$0xf]
    %v437 = vld [vmem:[#allocation8 + $0x50] sm:$0xf]
    %v438 = vld [vmem:[#allocation8 + $0x54] sm:$0xf]
    %v439 = vld [vmem:[#allocation8 + $0x58] sm:$0xf]
    %v440 = vld [vmem:[#allocation8 + $0x5c] sm:$0xf]
    %v441 = vld [vmem:[#allocation8 + $0x60] sm:$0xf]
    %v442 = vld [vmem:[#allocation8 + $0x64] sm:$0xf]
    %v443 = vld [vmem:[#allocation8 + $0x68] sm:$0xf]
    %v444 = vld [vmem:[#allocation8 + $0x6c] sm:$0xf]
    %v445 = vld [vmem:[#allocation8 + $0x70] sm:$0xf]
    %v446 = vld [vmem:[#allocation8 + $0x74] sm:$0xf]
    %v447 = vld [vmem:[#allocation8 + $0x78] sm:$0xf]
    %v448 = vld [vmem:[#allocation8 + $0x7c] sm:$0xf]
    %v481 = vunpack.c.l.b16 %v417
    %v482 = vunpack.c.l.b16 %v418
    %v483 = vunpack.c.l.b16 %v419
    %v484 = vunpack.c.l.b16 %v420
    %v485 = vunpack.c.l.b16 %v421
    %v486 = vunpack.c.l.b16 %v422
    %v487 = vunpack.c.l.b16 %v423
    %v488 = vunpack.c.l.b16 %v424
    %v489 = vunpack.c.l.b16 %v425
    %v490 = vunpack.c.l.b16 %v426
    %v491 = vunpack.c.l.b16 %v427
    %v492 = vunpack.c.l.b16 %v428
    %v493 = vunpack.c.l.b16 %v429
    %v494 = vunpack.c.l.b16 %v430
    %v495 = vunpack.c.l.b16 %v431
    %v496 = vunpack.c.l.b16 %v432
    %v497 = vunpack.c.l.b16 %v433
    %v498 = vunpack.c.l.b16 %v434
    %v499 = vunpack.c.l.b16 %v435
    %v500 = vunpack.c.l.b16 %v436
    %v501 = vunpack.c.l.b16 %v437
    %v502 = vunpack.c.l.b16 %v438
    %v503 = vunpack.c.l.b16 %v439
    %v504 = vunpack.c.l.b16 %v440
    %v505 = vunpack.c.l.b16 %v441
    %v506 = vunpack.c.l.b16 %v442
    %v507 = vunpack.c.l.b16 %v443
    %v508 = vunpack.c.l.b16 %v444
    %v509 = vunpack.c.l.b16 %v445
    %v510 = vunpack.c.l.b16 %v446
    %v511 = vunpack.c.l.b16 %v447
    %v512 = vunpack.c.l.b16 %v448
    %v513 = vpack.c.b16 %v482, %v481
    %v514 = vpack.c.b16 %v484, %v483
    %v515 = vpack.c.b16 %v486, %v485
    %v516 = vpack.c.b16 %v488, %v487
    %v517 = vpack.c.b16 %v490, %v489
    %v518 = vpack.c.b16 %v492, %v491
    %v519 = vpack.c.b16 %v494, %v493
    %v520 = vpack.c.b16 %v496, %v495
    %v521 = vpack.c.b16 %v498, %v497
    %v522 = vpack.c.b16 %v500, %v499
    %v523 = vpack.c.b16 %v502, %v501
    %v524 = vpack.c.b16 %v504, %v503
    %v525 = vpack.c.b16 %v506, %v505
    %v526 = vpack.c.b16 %v508, %v507
    %v527 = vpack.c.b16 %v510, %v509
    %v528 = vpack.c.b16 %v512, %v511
    %545 = vmatprep.subr.bf16.mxu0 0
    %546 = vmatpush1.bf16.msra.mxu0 %v513
    %547 = vmatprep.subr.bf16.mxu0 0
    %548 = vmatpush1.bf16.msra.mxu0 %v514
    %549 = vmatprep.subr.bf16.mxu0 0
    %550 = vmatpush1.bf16.msra.mxu0 %v515
    %551 = vmatprep.subr.bf16.mxu0 0
    %552 = vmatpush1.bf16.msra.mxu0 %v516
    %553 = vmatprep.subr.bf16.mxu0 0
    %554 = vmatpush1.bf16.msra.mxu0 %v517
    %555 = vmatprep.subr.bf16.mxu0 0
    %556 = vmatpush1.bf16.msra.mxu0 %v518
    %557 = vmatprep.subr.bf16.mxu0 0
    %558 = vmatpush1.bf16.msra.mxu0 %v519
    %559 = vmatprep.subr.bf16.mxu0 0
    %560 = vmatpush1.bf16.msra.mxu0 %v520
    %561 = vmatprep.subr.bf16.mxu0 0
    %562 = vmatpush1.bf16.msra.mxu0 %v521
    %563 = vmatprep.subr.bf16.mxu0 0
    %564 = vmatpush1.bf16.msra.mxu0 %v522
    %565 = vmatprep.subr.bf16.mxu0 0
    %566 = vmatpush1.bf16.msra.mxu0 %v523
    %567 = vmatprep.subr.bf16.mxu0 0
    %568 = vmatpush1.bf16.msra.mxu0 %v524
    %569 = vmatprep.subr.bf16.mxu0 0
    %570 = vmatpush1.bf16.msra.mxu0 %v525
    %571 = vmatprep.subr.bf16.mxu0 0
    %572 = vmatpush1.bf16.msra.mxu0 %v526
    %573 = vmatprep.subr.bf16.mxu0 0
    %574 = vmatpush1.bf16.msra.mxu0 %v527
    %575 = vmatprep.subr.bf16.mxu0 0
    %576 = vmatpush1.bf16.msra.mxu0 %v528
    %577 = vmatprep.mubr.bf16.mxu0 %v416
    %578 = vmatmul.mubr.bf16.gmra.mrb[0].mxu0 %v415
    %v579 = vpop.f32.mrb[0].mxu0
    %v580 = vadd.f32 0.0, %v579
    %v581 = vpop.f32.mrb[0].mxu0
    %v582 = vpop.f32.mrb[0].mxu0
    %v583 = vpop.f32.mrb[0].mxu0
    %584 = vdwg.mxu0
    %585 = vst [vmem:[#allocation10] sm:$0xff] %v580
    // Predicated region
    $region42: #{tpu_custom_call.1} parent=1 // pred_check
      _
    $region43: #{tpu_custom_call.1} parent=1 // pred_check_branch
      %587 = sbr.rel (0) target = $region45
    $region44: #{tpu_custom_call.1} parent=1 // pred_region
      %s589 = ssub.s32 128, 128
      %590 = vsyncadd [#allocation4], %s589
      %s592 = sshll.u32 [#allocation10], 4
      %s593 = int_to_ptr.vmem [resolvable:$true] %s592
      %595 = dma.vmem_to_hbm [thread:$0]  %s593, 128, %s6, [#allocation4]
    $region45: #{tpu_custom_call.1} parent=1 // pred_fallthru
      _
    // Predicated region
    $region46: #{tpu_custom_call.1} parent=1 // pred_check
      _
    $region47: #{tpu_custom_call.1} parent=1 // pred_check_branch
      %597 = sbr.rel (0) target = $region49
    $region48: #{tpu_custom_call.1} parent=1 // pred_region
      %598 = dma.done [#allocation4], 128
    $region49: #{tpu_custom_call.1} parent=1 // pred_fallthru
      _
    %599 = vsyncpa [#allocation3], 1
    %600 = vsyncpa [#allocation6], 1
    %601 = vsyncpa [#allocation9], 1
    %602 = vsyncpa [#allocation4], 1

</llo_original>
